<compile_context>
chip_gen: v7x
topology: tpu7x:2x2x1
jax: 0.10.0
libtpu: 0.0.40
codegen_flags: <defaults>
</compile_context>

<pallas_src>
import functools

import jax
import jax.numpy as jnp
from jax.experimental import pallas as pl
from jax.experimental.pallas import tpu as pltpu


def _sgconv_kernel(tile_n, a_ref, x_ref, w_ref, b_ref, o_ref, h_ref):
    """Fused SGConv forward: out = (A_norm^K @ x) @ W + b.

    a_ref: (tile_n, N)     bf16 row tile of the normalized adjacency
    x_ref: (N, F_in)       bf16 node features (resident, fetched once)
    w_ref: (F_in, F_out)   bf16 linear weight
    b_ref: (1, F_out)      f32  bias
    o_ref: (tile_n, F_out) f32  output row tile
    h_ref: (2, N, F_in)    f32  ping-pong scratch holding A^k @ x across hops
    """
    k = pl.program_id(0)                      # hop index (outer, sequential)
    i = pl.program_id(1)                      # row-tile index (inner)
    last_hop = k == pl.num_programs(0) - 1

    # Stage h^(0) = x once into the slot read by hop 0 (slot 1 == (0-1) % 2).
    @pl.when(jnp.logical_and(k == 0, i == 0))
    def _():
        h_ref[1] = x_ref[...].astype(jnp.float32)

    # The output block is revisited once per hop; give the skipped visits a
    # defined value (tiny store, hop 0 only; overwritten by the final hop).
    @pl.when(jnp.logical_and(k == 0, jnp.logical_not(last_hop)))
    def _():
        o_ref[...] = jnp.zeros_like(o_ref)

    # One propagation step for this row tile: A[rows, :] @ h^(k-1).
    # bf16 MXU operands, f32 accumulation; the f32 result is what gets stored.
    src_slot = (k + 1) % 2                    # == (k - 1) % 2  (ping-pong source)
    prop = jnp.dot(a_ref[...], h_ref[src_slot].astype(jnp.bfloat16),
                   preferred_element_type=jnp.float32)

    row0 = pl.multiple_of(i * tile_n, tile_n)
    not_last = jnp.logical_not(last_hop)

    @pl.when(jnp.logical_and(not_last, (k % 2) == 0))
    def _():
        h_ref[0, pl.ds(row0, tile_n), :] = prop

    @pl.when(jnp.logical_and(not_last, (k % 2) == 1))
    def _():
        h_ref[1, pl.ds(row0, tile_n), :] = prop

    # Final hop: fuse the linear layer + bias, one lane-dense store per tile.
    @pl.when(last_hop)
    def _():
        y = jnp.dot(prop.astype(jnp.bfloat16), w_ref[...],
                    preferred_element_type=jnp.float32) + b_ref[...]
        o_ref[...] = y.astype(o_ref.dtype)


def _pick_tile_n(n, cap=256):
    """Largest multiple-of-8 row tile that divides N (capped); fallback N."""
    for cand in (512, 256, 128, 64, 32, 16, 8):
        if cand <= cap and n % cand == 0:
            return cand
    return n


def sgconv_pallas(a_norm, x, w, b, hops, *, tile_n=None):
    """out = Linear(A_norm^hops @ x) with weight w (F_in, F_out), bias b (F_out)."""
    assert hops >= 1
    n, f_in = x.shape
    f_out = w.shape[1]
    if tile_n is None:
        tile_n = _pick_tile_n(n)
    assert n % tile_n == 0 and (tile_n % 8 == 0 or tile_n == n)

    # bf16 feed for the MXU; also halves HBM bytes of the dominant N*N stream.
    a16 = a_norm.astype(jnp.bfloat16)
    x16 = x.astype(jnp.bfloat16)
    w16 = w.astype(jnp.bfloat16)
    b2 = b.reshape(1, f_out).astype(jnp.float32)

    kernel = functools.partial(_sgconv_kernel, tile_n)
    return pl.pallas_call(
        kernel,
        out_shape=jax.ShapeDtypeStruct((n, f_out), jnp.float32),
        grid_spec=pltpu.PrefetchScalarGridSpec(
            num_scalar_prefetch=0,
            grid=(hops, n // tile_n),
            in_specs=[
                pl.BlockSpec((tile_n, n), lambda k, i: (i, 0)),     # A row tile (streamed)
                pl.BlockSpec((n, f_in), lambda k, i: (0, 0)),       # x (resident)
                pl.BlockSpec((f_in, f_out), lambda k, i: (0, 0)),   # W (resident)
                pl.BlockSpec((1, f_out), lambda k, i: (0, 0)),      # bias
            ],
            out_specs=pl.BlockSpec((tile_n, f_out), lambda k, i: (i, 0)),
            scratch_shapes=[pltpu.VMEM((2, n, f_in), jnp.float32)],
        ),
        compiler_params=pltpu.CompilerParams(
            # Hop axis carries a cross-tile dependency through the VMEM scratch,
            # so both axes must stay sequential.
            dimension_semantics=("arbitrary", "arbitrary"),
        ),
    )(a16, x16, w16, b2)


def gcn_norm_dense(edge_index, num_nodes):
    """Dense symmetric GCN normalization with self loops (gcn_norm equivalent)."""
    src, dst = edge_index[0], edge_index[1]
    a = jnp.zeros((num_nodes, num_nodes), jnp.float32).at[dst, src].add(1.0)
    a = a + jnp.eye(num_nodes, dtype=jnp.float32)            # add self loops
    deg = a.sum(axis=1)
    dinv_sqrt = jnp.where(deg > 0, 1.0 / jnp.sqrt(deg), 0.0)
    return a * dinv_sqrt[:, None] * dinv_sqrt[None, :]


def sg_forward(x, edge_index, w, b, hops, *, tile_n=None):
    """SG.forward(x, edge_index) == SGConv(in, out, K=hops)(x, edge_index)."""
    n = x.shape[0]
    a_norm = gcn_norm_dense(edge_index, n)     # cached=True: computed once per graph
    return sgconv_pallas(a_norm, x, w, b, hops, tile_n=tile_n)


if __name__ == "__main__":
    # Small synthetic problem: N=256 nodes, in=32, out=16 features, K=3 hops.
    N, IN_CH, OUT_CH, HOPS = 256, 32, 16, 3

    key = jax.random.PRNGKey(0)
    k_x, k_w, k_b = jax.random.split(key, 3)
    x = jax.random.normal(k_x, (N, IN_CH), dtype=jnp.float32)

    # Deterministic Linear-style init (uniform +/- 1/sqrt(fan_in)).
    scale = 1.0 / (IN_CH ** 0.5)
    w = jax.random.uniform(k_w, (IN_CH, OUT_CH), jnp.float32, -scale, scale)
    b = jax.random.uniform(k_b, (OUT_CH,), jnp.float32, -scale, scale)

    # Deterministic graph: bidirectional ring plus +5 skip edges, shape (2, 4N).
    idx = jnp.arange(N, dtype=jnp.int32)
    src = jnp.concatenate([idx, (idx + 1) % N, idx, (idx + 5) % N])
    dst = jnp.concatenate([(idx + 1) % N, idx, (idx + 5) % N, idx])
    edge_index = jnp.stack([src, dst], axis=0)

    # tile_n=128 -> grid=(HOPS, 2): exercises the multi-tile / ping-pong path.
    out = sg_forward(x, edge_index, w, b, HOPS, tile_n=128)
    out = jax.block_until_ready(out)
    assert out.shape == (N, OUT_CH), out.shape

    # Matched-precision JAX reference (same bf16 operands / f32 accumulation).
    a_norm = gcn_norm_dense(edge_index, N)
    a16 = a_norm.astype(jnp.bfloat16)
    h = jnp.dot(a16, x.astype(jnp.bfloat16), preferred_element_type=jnp.float32)
    for _ in range(HOPS - 1):
        h = jnp.dot(a16, h.astype(jnp.bfloat16), preferred_element_type=jnp.float32)
    ref = jnp.dot(h.astype(jnp.bfloat16), w.astype(jnp.bfloat16),
                  preferred_element_type=jnp.float32) + b[None, :]
    max_err = float(jnp.max(jnp.abs(out - ref)))
    assert max_err < 1e-3, max_err

    print("KERNEL_OK")
</pallas_src>

<mosaic_0001>
module attributes {stable_mosaic.version = 11 : i64} {
  func.func @_sgconv_kernel(%arg0: i32, %arg1: i32, %arg2: memref<128x256xbf16, #tpu.memory_space<vmem>>, %arg3: memref<256x32xbf16, #tpu.memory_space<vmem>>, %arg4: memref<32x16xbf16, #tpu.memory_space<vmem>>, %arg5: memref<1x16xf32, #tpu.memory_space<vmem>>, %arg6: memref<128x16xf32, #tpu.memory_space<vmem>>, %arg7: memref<2x256x32xf32, #tpu.memory_space<vmem>>) attributes {dimension_semantics = [#tpu.dimension_semantics<arbitrary>, #tpu.dimension_semantics<arbitrary>], iteration_bounds = array<i64: 3, 2>, scalar_prefetch = 0 : i64, scratch_operands = 1 : i64, tpu.core_type = #tpu.core_type<tc>, window_params = [{transform_indices = @transform_0, window_bounds = array<i64: 128, 256>}, {pipeline_mode = #tpu.pipeline_mode<synchronous>, transform_indices = @transform_1, window_bounds = array<i64: 256, 32>}, {pipeline_mode = #tpu.pipeline_mode<synchronous>, transform_indices = @transform_2, window_bounds = array<i64: 32, 16>}, {pipeline_mode = #tpu.pipeline_mode<synchronous>, transform_indices = @transform_3, window_bounds = array<i64: 1, 16>}, {transform_indices = @transform_4, window_bounds = array<i64: 128, 16>}]} {
    %c2_i32 = arith.constant 2 : i32
    %0 = arith.cmpi eq, %arg0, %c2_i32 : i32
    %c0_i32 = arith.constant 0 : i32
    %1 = arith.cmpi eq, %arg0, %c0_i32 : i32
    %c0_i32_0 = arith.constant 0 : i32
    %2 = arith.cmpi eq, %arg1, %c0_i32_0 : i32
    %3 = arith.andi %1, %2 : i1
    %4 = arith.extui %3 : i1 to i32
    %c0_i32_1 = arith.constant 0 : i32
    %5 = arith.cmpi ne, %4, %c0_i32_1 : i32
    scf.if %5 {
      %c0_31 = arith.constant 0 : index
      %c0_32 = arith.constant 0 : index
      %61 = vector.load %arg3[%c0_31, %c0_32] : memref<256x32xbf16, #tpu.memory_space<vmem>>, vector<256x32xbf16>
      %62 = arith.extf %61 : vector<256x32xbf16> to vector<256x32xf32>
      %c1 = arith.constant 1 : index
      %c0_33 = arith.constant 0 : index
      %c0_34 = arith.constant 0 : index
      %63 = vector.load %arg7[%c1, %c0_33, %c0_34] : memref<2x256x32xf32, #tpu.memory_space<vmem>>, vector<1x256x32xf32>
      %64 = vector.shape_cast %63 : vector<1x256x32xf32> to vector<256x32xf32>
      %65 = vector.shape_cast %62 : vector<256x32xf32> to vector<1x256x32xf32>
      tpu.vector_store %arg7[%c1, %c0_33, %c0_34], %65 {strides = array<i32>} : memref<2x256x32xf32, #tpu.memory_space<vmem>>, vector<1x256x32xf32>,
    } else {
    }
    %c0_i32_2 = arith.constant 0 : i32
    %6 = arith.cmpi eq, %arg0, %c0_i32_2 : i32
    %true = arith.constant true
    %7 = arith.xori %0, %true : i1
    %8 = arith.andi %6, %7 : i1
    %9 = arith.extui %8 : i1 to i32
    %c0_i32_3 = arith.constant 0 : i32
    %10 = arith.cmpi ne, %9, %c0_i32_3 : i32
    scf.if %10 {
      %cst_31 = arith.constant 0.000000e+00 : f32
      %61 = vector.broadcast %cst_31 : f32 to vector<128x16xf32>
      %c0_32 = arith.constant 0 : index
      %c0_33 = arith.constant 0 : index
      %62 = vector.load %arg6[%c0_32, %c0_33] : memref<128x16xf32, #tpu.memory_space<vmem>>, vector<128x16xf32>
      tpu.vector_store %arg6[%c0_32, %c0_33], %61 {strides = array<i32>} : memref<128x16xf32, #tpu.memory_space<vmem>>, vector<128x16xf32>,
    } else {
    }
    %c1_i32 = arith.constant 1 : i32
    %11 = arith.addi %arg0, %c1_i32 : i32
    %c2_i32_4 = arith.constant 2 : i32
    %c0_i32_5 = arith.constant 0 : i32
    %12 = arith.cmpi eq, %c2_i32_4, %c0_i32_5 : i32
    %c1_i32_6 = arith.constant 1 : i32
    %13 = arith.select %12, %c1_i32_6, %c2_i32_4 : i32
    %14 = arith.remsi %11, %13 : i32
    %c0_i32_7 = arith.constant 0 : i32
    %15 = arith.cmpi ne, %14, %c0_i32_7 : i32
    %c0_i32_8 = arith.constant 0 : i32
    %16 = arith.cmpi slt, %14, %c0_i32_8 : i32
    %c0_i32_9 = arith.constant 0 : i32
    %17 = arith.cmpi slt, %13, %c0_i32_9 : i32
    %18 = arith.xori %16, %17 : i1
    %19 = arith.andi %18, %15 : i1
    %20 = arith.addi %14, %13 : i32
    %21 = arith.select %19, %20, %14 : i32
    %c0 = arith.constant 0 : index
    %c0_10 = arith.constant 0 : index
    %22 = vector.load %arg2[%c0, %c0_10] : memref<128x256xbf16, #tpu.memory_space<vmem>>, vector<128x256xbf16>
    %23 = arith.index_cast %21 : i32 to index
    %c0_11 = arith.constant 0 : index
    %c0_12 = arith.constant 0 : index
    %24 = vector.load %arg7[%23, %c0_11, %c0_12] : memref<2x256x32xf32, #tpu.memory_space<vmem>>, vector<1x256x32xf32>
    %25 = vector.shape_cast %24 : vector<1x256x32xf32> to vector<256x32xf32>
    %26 = arith.truncf %25 : vector<256x32xf32> to vector<256x32xbf16>
    %cst = arith.constant dense<0.000000e+00> : vector<128x32xf32>
    %27 = tpu.matmul %22, %26, %cst {dimension_numbers = #tpu.dot_dimension_numbers<[1], [0], [0], [1], [0, 0, 1, 1], [], []>} : vector<128x256xbf16>, vector<256x32xbf16>, vector<128x32xf32> -> vector<128x32xf32>
    %c128_i32 = arith.constant 128 : i32
    %28 = arith.muli %arg1, %c128_i32 : i32
    %29 = tpu.assume_multiple %28, 128 : i32
    %true_13 = arith.constant true
    %30 = arith.xori %0, %true_13 : i1
    %c2_i32_14 = arith.constant 2 : i32
    %c0_i32_15 = arith.constant 0 : i32
    %31 = arith.cmpi eq, %c2_i32_14, %c0_i32_15 : i32
    %c1_i32_16 = arith.constant 1 : i32
    %32 = arith.select %31, %c1_i32_16, %c2_i32_14 : i32
    %33 = arith.remsi %arg0, %32 : i32
    %c0_i32_17 = arith.constant 0 : i32
    %34 = arith.cmpi ne, %33, %c0_i32_17 : i32
    %c0_i32_18 = arith.constant 0 : i32
    %35 = arith.cmpi slt, %33, %c0_i32_18 : i32
    %c0_i32_19 = arith.constant 0 : i32
    %36 = arith.cmpi slt, %32, %c0_i32_19 : i32
    %37 = arith.xori %35, %36 : i1
    %38 = arith.andi %37, %34 : i1
    %39 = arith.addi %33, %32 : i32
    %40 = arith.select %38, %39, %33 : i32
    %c0_i32_20 = arith.constant 0 : i32
    %41 = arith.cmpi eq, %40, %c0_i32_20 : i32
    %42 = arith.andi %30, %41 : i1
    %43 = arith.extui %42 : i1 to i32
    %c0_i32_21 = arith.constant 0 : i32
    %44 = arith.cmpi ne, %43, %c0_i32_21 : i32
    scf.if %44 {
      %c0_31 = arith.constant 0 : index
      %61 = arith.index_cast %29 : i32 to index
      %c0_32 = arith.constant 0 : index
      %62 = vector.load %arg7[%c0_31, %61, %c0_32] : memref<2x256x32xf32, #tpu.memory_space<vmem>>, vector<1x128x32xf32>
      %63 = vector.shape_cast %62 : vector<1x128x32xf32> to vector<128x32xf32>
      %64 = vector.shape_cast %27 : vector<128x32xf32> to vector<1x128x32xf32>
      tpu.vector_store %arg7[%c0_31, %61, %c0_32], %64 {strides = array<i32>} : memref<2x256x32xf32, #tpu.memory_space<vmem>>, vector<1x128x32xf32>,
    } else {
    }
    %c2_i32_22 = arith.constant 2 : i32
    %c0_i32_23 = arith.constant 0 : i32
    %45 = arith.cmpi eq, %c2_i32_22, %c0_i32_23 : i32
    %c1_i32_24 = arith.constant 1 : i32
    %46 = arith.select %45, %c1_i32_24, %c2_i32_22 : i32
    %47 = arith.remsi %arg0, %46 : i32
    %c0_i32_25 = arith.constant 0 : i32
    %48 = arith.cmpi ne, %47, %c0_i32_25 : i32
    %c0_i32_26 = arith.constant 0 : i32
    %49 = arith.cmpi slt, %47, %c0_i32_26 : i32
    %c0_i32_27 = arith.constant 0 : i32
    %50 = arith.cmpi slt, %46, %c0_i32_27 : i32
    %51 = arith.xori %49, %50 : i1
    %52 = arith.andi %51, %48 : i1
    %53 = arith.addi %47, %46 : i32
    %54 = arith.select %52, %53, %47 : i32
    %c1_i32_28 = arith.constant 1 : i32
    %55 = arith.cmpi eq, %54, %c1_i32_28 : i32
    %56 = arith.andi %30, %55 : i1
    %57 = arith.extui %56 : i1 to i32
    %c0_i32_29 = arith.constant 0 : i32
    %58 = arith.cmpi ne, %57, %c0_i32_29 : i32
    scf.if %58 {
      %c1 = arith.constant 1 : index
      %61 = arith.index_cast %29 : i32 to index
      %c0_31 = arith.constant 0 : index
      %62 = vector.load %arg7[%c1, %61, %c0_31] : memref<2x256x32xf32, #tpu.memory_space<vmem>>, vector<1x128x32xf32>
      %63 = vector.shape_cast %62 : vector<1x128x32xf32> to vector<128x32xf32>
      %64 = vector.shape_cast %27 : vector<128x32xf32> to vector<1x128x32xf32>
      tpu.vector_store %arg7[%c1, %61, %c0_31], %64 {strides = array<i32>} : memref<2x256x32xf32, #tpu.memory_space<vmem>>, vector<1x128x32xf32>,
    } else {
    }
    %59 = arith.extui %0 : i1 to i32
    %c0_i32_30 = arith.constant 0 : i32
    %60 = arith.cmpi ne, %59, %c0_i32_30 : i32
    scf.if %60 {
      %61 = arith.truncf %27 : vector<128x32xf32> to vector<128x32xbf16>
      %c0_31 = arith.constant 0 : index
      %c0_32 = arith.constant 0 : index
      %62 = vector.load %arg4[%c0_31, %c0_32] : memref<32x16xbf16, #tpu.memory_space<vmem>>, vector<32x16xbf16>
      %cst_33 = arith.constant dense<0.000000e+00> : vector<128x16xf32>
      %63 = tpu.matmul %61, %62, %cst_33 {dimension_numbers = #tpu.dot_dimension_numbers<[1], [0], [0], [1], [0, 0, 1, 1], [], []>} : vector<128x32xbf16>, vector<32x16xbf16>, vector<128x16xf32> -> vector<128x16xf32>
      %c0_34 = arith.constant 0 : index
      %c0_35 = arith.constant 0 : index
      %64 = vector.load %arg5[%c0_34, %c0_35] : memref<1x16xf32, #tpu.memory_space<vmem>>, vector<1x16xf32>
      %65 = vector.broadcast %64 : vector<1x16xf32> to vector<128x16xf32>
      %66 = arith.addf %63, %65 : vector<128x16xf32>
      %c0_36 = arith.constant 0 : index
      %c0_37 = arith.constant 0 : index
      %67 = vector.load %arg6[%c0_36, %c0_37] : memref<128x16xf32, #tpu.memory_space<vmem>>, vector<128x16xf32>
      tpu.vector_store %arg6[%c0_36, %c0_37], %66 {strides = array<i32>} : memref<128x16xf32, #tpu.memory_space<vmem>>, vector<128x16xf32>,
    } else {
    }
    return
  }
  func.func @transform_0(%arg0: i32, %arg1: i32) -> (i32, i32) {
    %c0_i32 = arith.constant 0 : i32
    %c0_i32_0 = arith.constant 0 : i32
    return %arg1, %c0_i32 : i32, i32
  }
  func.func @transform_1(%arg0: i32, %arg1: i32) -> (i32, i32) {
    %c0_i32 = arith.constant 0 : i32
    %c0_i32_0 = arith.constant 0 : i32
    %c0_i32_1 = arith.constant 0 : i32
    return %c0_i32, %c0_i32_0 : i32, i32
  }
  func.func @transform_2(%arg0: i32, %arg1: i32) -> (i32, i32) {
    %c0_i32 = arith.constant 0 : i32
    %c0_i32_0 = arith.constant 0 : i32
    %c0_i32_1 = arith.constant 0 : i32
    return %c0_i32, %c0_i32_0 : i32, i32
  }
  func.func @transform_3(%arg0: i32, %arg1: i32) -> (i32, i32) {
    %c0_i32 = arith.constant 0 : i32
    %c0_i32_0 = arith.constant 0 : i32
    %c0_i32_1 = arith.constant 0 : i32
    return %c0_i32, %c0_i32_0 : i32, i32
  }
  func.func @transform_4(%arg0: i32, %arg1: i32) -> (i32, i32) {
    %c0_i32 = arith.constant 0 : i32
    %c0_i32_0 = arith.constant 0 : i32
    return %arg1, %c0_i32 : i32, i32
  }
}

</mosaic_0001>

<llo_original>
// kernel: tpu_custom_call.1
$region0: #{tpu_custom_call.1}
  #allocation0 [shape = 'u32[]', space=smem, size = 0x4, offset = 0x4, fixed_abs, tag = 'smem constant byte address 0x4 - core index']
  #allocation1 [shape = 'u32[144,128]{1,0:T(1,128)}', space=vmem, size = 0x12000, scoped, tag = 'internal scratch']
  #allocation2 [shape = 'f32[2,256,32]{2,1,0:T(8,128)}', space=vmem, size = 0x40000, scoped, tag = 'scratch operand']
  %s0 = inlined_call_operand.hbm [shape: bf16[256,256], index: 0, kind: input, shape index: {}]
  %s1 = inlined_call_operand.vmem [shape: bf16[256,32], index: 1, kind: input, shape index: {}]
  %s2 = inlined_call_operand.vmem [shape: bf16[32,16], index: 2, kind: input, shape index: {}]
  %s3 = inlined_call_operand.vmem [shape: f32[1,16], index: 3, kind: input, shape index: {}]
  %s4 = inlined_call_operand.vmem [shape: f32[256,16], index: 4, kind: output, shape index: {}]
  %s5 = sld [smem:[#allocation0]]
  $region73: #{tpu_custom_call.1} parent=0
    _
  %s7 = ssub.s32 1, %s5
  %s8 = scalar_select 0, %s7, %s5
  $region1: #{tpu_custom_call.1} parent=0
    #allocation3 [shape = 'u8[131072]{0}', space=vmem, size = 0x20000, scoped, tag = 'input window, operand 0']
    #allocation4 [shape = 's32[2]{0}', space=sflag, size = 0x8, scoped, tag = 'scoped memory for tpu_custom_call.1']
    %9 = vsyncpa [#allocation4], 0
    %s10 = scalar_lea.sflag [#allocation4], 1
    %11 = vsyncpa %s10, 0
    loop: start=0, step=1, limit=8
    $region2: #{tpu_custom_call.1} parent=1 // loop_pre_header
      _
    $region3: #{tpu_custom_call.1} parent=1 // loop_header
      %s13 = sphi 0, %s17
      %p14 = scmp.ge.s32.totalorder %s13, 8
      %s20 = sphi 0, %s32
      %s21 = sphi 0, %s28
      %s22 = sphi 0, %s20
      %s23 = sphi 0, %s21
      %s24 = sphi 0, %s22
      %s25 = sphi 0, %s23
      %s35 = sphi 0, %s37
      %s38 = sphi 0, %s35
      %s39 = sphi 0, %s38
      %s55 = sphi 0, %s39
      %s59 = sphi 0, %s59
      %s61 = sphi 0, %s59
      %s62 = sphi 0, %s61
      %s76 = sphi 0, %s62
      %s80 = sphi 0, %s80
      %s82 = sphi 0, %s80
      %s83 = sphi 0, %s82
      %s97 = sphi 0, %s83
      %s101 = sphi 0, %s101
      %s103 = sphi 0, %s101
      %s104 = sphi 0, %s103
      %s118 = sphi 0, %s104
      %s124 = sphi 0, %s126
      %s127 = sphi 0, %s124
      %s128 = sphi 0, %s127
      %s144 = sphi 0, %s128
    $region4: #{tpu_custom_call.1} parent=1 // loop_header_branch
      %16 = sbr.rel (%p14) target = $region8
    $region5: #{tpu_custom_call.1} parent=1 // loop_body
      %s18 = ssub.s32 %s13, 1
      %s19 = ssub.s32 %s13, 2
      %s26 = sadd.s32 1, %s21
      %p27 = scmp.ge.s32.totalorder %s26, 2
      %s28 = scalar_select %p27, 0, %s26
      %s29 = sadd.s32 1, %s20
      %s30 = scalar_select %p27, %s29, %s20
      %p31 = scmp.ge.s32.totalorder %s30, 3
      %s32 = scalar_select %p31, 0, %s30
      %s33 = ssub.s32 %s21, %s28
      %p34 = scmp.eq.s32.totalorder %s33, 0
      %s36 = sadd.s32 %s35, 1
      %s37 = scalar_select %p34, %s35, %s36
      %p40 = pneg %p34
      %p41 = scmp.eq.s32.totalorder %s13, 5
      %p42 = por %p40, %p41
      %p43 = scmp.ne.s32.totalorder %s35, %s38
      %p44 = scmp.eq.s32.totalorder %s13, 0
      %p45 = por %p43, %p44
      %p46 = scmp.ne.s32.totalorder %s35, %s38
      %p47 = scmp.eq.s32.totalorder %s18, 5
      %p48 = por %p46, %p47
      %p49 = scmp.ne.s32.totalorder %s38, %s39
      %p50 = scmp.eq.s32.totalorder %s18, 0
      %p51 = por %p49, %p50
      %p52 = scmp.ne.s32.totalorder %s38, %s39
      %p53 = scmp.eq.s32.totalorder %s19, 5
      %p54 = por %p52, %p53
      %p56 = scmp.ne.s32.totalorder %s39, %s55
      %p57 = scmp.eq.s32.totalorder %s19, 0
      %p58 = por %p56, %p57
      %s60 = sadd.s32 %s59, 1
      %p63 = scmp.eq.s32.totalorder %s13, 5
      %p64 = scmp.ne.s32.totalorder %s59, %s61
      %p65 = scmp.eq.s32.totalorder %s13, 0
      %p66 = por %p64, %p65
      %p67 = scmp.ne.s32.totalorder %s59, %s61
      %p68 = scmp.eq.s32.totalorder %s18, 5
      %p69 = por %p67, %p68
      %p70 = scmp.ne.s32.totalorder %s61, %s62
      %p71 = scmp.eq.s32.totalorder %s18, 0
      %p72 = por %p70, %p71
      %p73 = scmp.ne.s32.totalorder %s61, %s62
      %p74 = scmp.eq.s32.totalorder %s19, 5
      %p75 = por %p73, %p74
      %p77 = scmp.ne.s32.totalorder %s62, %s76
      %p78 = scmp.eq.s32.totalorder %s19, 0
      %p79 = por %p77, %p78
      %s81 = sadd.s32 %s80, 1
      %p84 = scmp.eq.s32.totalorder %s13, 5
      %p85 = scmp.ne.s32.totalorder %s80, %s82
      %p86 = scmp.eq.s32.totalorder %s13, 0
      %p87 = por %p85, %p86
      %p88 = scmp.ne.s32.totalorder %s80, %s82
      %p89 = scmp.eq.s32.totalorder %s18, 5
      %p90 = por %p88, %p89
      %p91 = scmp.ne.s32.totalorder %s82, %s83
      %p92 = scmp.eq.s32.totalorder %s18, 0
      %p93 = por %p91, %p92
      %p94 = scmp.ne.s32.totalorder %s82, %s83
      %p95 = scmp.eq.s32.totalorder %s19, 5
      %p96 = por %p94, %p95
      %p98 = scmp.ne.s32.totalorder %s83, %s97
      %p99 = scmp.eq.s32.totalorder %s19, 0
      %p100 = por %p98, %p99
      %s102 = sadd.s32 %s101, 1
      %p105 = scmp.eq.s32.totalorder %s13, 5
      %p106 = scmp.ne.s32.totalorder %s101, %s103
      %p107 = scmp.eq.s32.totalorder %s13, 0
      %p108 = por %p106, %p107
      %p109 = scmp.ne.s32.totalorder %s101, %s103
      %p110 = scmp.eq.s32.totalorder %s18, 5
      %p111 = por %p109, %p110
      %p112 = scmp.ne.s32.totalorder %s103, %s104
      %p113 = scmp.eq.s32.totalorder %s18, 0
      %p114 = por %p112, %p113
      %p115 = scmp.ne.s32.totalorder %s103, %s104
      %p116 = scmp.eq.s32.totalorder %s19, 5
      %p117 = por %p115, %p116
      %p119 = scmp.ne.s32.totalorder %s104, %s118
      %p120 = scmp.eq.s32.totalorder %s19, 0
      %p121 = por %p119, %p120
      %s122 = ssub.s32 %s21, %s28
      %p123 = scmp.eq.s32.totalorder %s122, 0
      %s125 = sadd.s32 %s124, 1
      %s126 = scalar_select %p123, %s124, %s125
      %p129 = pneg %p123
      %p130 = scmp.eq.s32.totalorder %s13, 5
      %p131 = por %p129, %p130
      %p132 = scmp.ne.s32.totalorder %s124, %s127
      %p133 = scmp.eq.s32.totalorder %s13, 0
      %p134 = por %p132, %p133
      %p135 = scmp.ne.s32.totalorder %s124, %s127
      %p136 = scmp.eq.s32.totalorder %s18, 5
      %p137 = por %p135, %p136
      %p138 = scmp.ne.s32.totalorder %s127, %s128
      %p139 = scmp.eq.s32.totalorder %s18, 0
      %p140 = por %p138, %p139
      %p141 = scmp.ne.s32.totalorder %s127, %s128
      %p142 = scmp.eq.s32.totalorder %s19, 5
      %p143 = por %p141, %p142
      %p145 = scmp.ne.s32.totalorder %s128, %s144
      %p146 = scmp.eq.s32.totalorder %s19, 0
      %p147 = por %p145, %p146
      %p148 = scmp.le.s32.totalorder 1, %s13
      %p149 = scmp.lt.s32.totalorder %s13, 7
      %p150 = pnand %p148, %p149
      %p151 = pneg %p150
      // Predicated region
      $region9: #{tpu_custom_call.1} parent=5 // pred_check
        _
      $region10: #{tpu_custom_call.1} parent=5 // pred_check_branch
        %153 = sbr.rel (%p150) target = $region12
      $region11: #{tpu_custom_call.1} parent=5 // pred_region
        %s154 = ssub.s32 %s13, 1
        // Predicated region
        $region13: #{tpu_custom_call.1} parent=11 // pred_check
          %p155 = pneg %p72
        $region14: #{tpu_custom_call.1} parent=11 // pred_check_branch
          %157 = sbr.rel (%p155) target = $region16
        $region15: #{tpu_custom_call.1} parent=11 // pred_region
          _
        $region16: #{tpu_custom_call.1} parent=11 // pred_fallthru
          _
        // Predicated region
        $region17: #{tpu_custom_call.1} parent=11 // pred_check
          %p158 = pneg %p93
        $region18: #{tpu_custom_call.1} parent=11 // pred_check_branch
          %160 = sbr.rel (%p158) target = $region20
        $region19: #{tpu_custom_call.1} parent=11 // pred_region
          _
        $region20: #{tpu_custom_call.1} parent=11 // pred_fallthru
          _
        // Predicated region
        $region21: #{tpu_custom_call.1} parent=11 // pred_check
          %p161 = pneg %p114
        $region22: #{tpu_custom_call.1} parent=11 // pred_check_branch
          %163 = sbr.rel (%p161) target = $region24
        $region23: #{tpu_custom_call.1} parent=11 // pred_region
          _
        $region24: #{tpu_custom_call.1} parent=11 // pred_fallthru
          _
      $region12: #{tpu_custom_call.1} parent=5 // pred_fallthru
        _
      %p164 = scmp.lt.s32.totalorder %s13, 6
      // Predicated region
      $region25: #{tpu_custom_call.1} parent=5 // pred_check
        %p165 = pneg %p164
      $region26: #{tpu_custom_call.1} parent=5 // pred_check_branch
        %167 = sbr.rel (%p165) target = $region28
      $region27: #{tpu_custom_call.1} parent=5 // pred_region
        // Predicated region
        $region29: #{tpu_custom_call.1} parent=27 // pred_check
          %p168 = pneg %p45
        $region30: #{tpu_custom_call.1} parent=27 // pred_check_branch
          %170 = sbr.rel (%p168) target = $region32
        $region31: #{tpu_custom_call.1} parent=27 // pred_region
          %s171 = sand.u32 %s35, 1
          %s172 = scalar_lea.sflag [#allocation4], %s171
          %s173 = sand.u32 %s35, 1
          %s174 = smul.addr %s173, 128
          %s175 = scalar_lea.vmem [#allocation3], %s174
          %s176 = smul.u32 16, %s21
          %s178 = ssub.s32 2048, 2048
          %179 = vsyncadd %s172, %s178
          %s180 = smul.addr %s176, 2
          %s181 = smul.addr %s180, 64
          %s182 = scalar_lea.hbm %s0, %s181
          %s183 = sshll.u32 %s175, 4
          %s184 = int_to_ptr.vmem [resolvable:$true] %s183
          %189 = dma.hbm_to_vmem [thread:$0]  %s182, 2048, %s184, %s172, 128, 128, 8
        $region32: #{tpu_custom_call.1} parent=27 // pred_fallthru
          _
      $region28: #{tpu_custom_call.1} parent=5 // pred_fallthru
        _
      %p190 = scmp.le.s32.totalorder 1, %s13
      %p191 = scmp.lt.s32.totalorder %s13, 7
      %p192 = pnand %p190, %p191
      %p193 = pneg %p192
      // Predicated region
      $region33: #{tpu_custom_call.1} parent=5 // pred_check
        _
      $region34: #{tpu_custom_call.1} parent=5 // pred_check_branch
        %195 = sbr.rel (%p192) target = $region36
      $region35: #{tpu_custom_call.1} parent=5 // pred_region
        %s196 = ssub.s32 %s13, 1
        %s197 = sand.u32 %s38, 1
        %s198 = scalar_lea.sflag [#allocation4], %s197
        %s199 = sand.u32 %s38, 1
        %s200 = smul.addr %s199, 128
        %s201 = scalar_lea.vmem [#allocation3], %s200
        // Predicated region
        $region37: #{tpu_custom_call.1} parent=35 // pred_check
          %p202 = pneg %p51
        $region38: #{tpu_custom_call.1} parent=35 // pred_check_branch
          %204 = sbr.rel (%p202) target = $region40
        $region39: #{tpu_custom_call.1} parent=35 // pred_region
          %205 = dma.done %s198, 2048
        $region40: #{tpu_custom_call.1} parent=35 // pred_fallthru
          _
        %s206 = sand.u32 %s38, 1
        %s207 = scalar_lea.sflag [#allocation4], %s206
        %s208 = sand.u32 %s38, 1
        %s209 = smul.addr %s208, 128
        %s210 = scalar_lea.vmem [#allocation3], %s209
        %p211 = pneg %p51
        %p212 = pneg %p48
        %p213 = pneg %p72
        %p214 = pneg %p69
        %p215 = pneg %p93
        %p216 = pneg %p90
        %p217 = pneg %p114
        %p218 = pneg %p111
        %p219 = pneg %p140
        %p220 = pneg %p137
        %s221 = smul.u32 16, %s23
        %p222 = scmp.lt.s32.totalorder %s221, 31
        %s223 = scalar_select %p222, %s221, 31
        %s224 = smul.addr %s223, 8
        %s225 = scalar_lea.vmem %s4, %s224
        %s226 = smul.u32 16, %s23
        %s227 = smul.u32 16, %s23
        %p228 = scmp.lt.s32.totalorder %s227, 31
        %s229 = scalar_select %p228, %s227, 31
        %s230 = smul.addr %s229, 8
        %s231 = scalar_lea.vmem %s4, %s230
        %s232 = smul.u32 16, %s23
        %p234 = scmp.eq.s32.totalorder %s22, 2
        %p235 = scmp.eq.s32.totalorder %s22, 0
        %p236 = scmp.eq.s32.totalorder %s23, 0
        %p237 = pnand %p235, %p236
        %p238 = pneg %p237
        // Predicated region
        $region41: #{tpu_custom_call.1} parent=35 // pred_check
          _
        $region42: #{tpu_custom_call.1} parent=35 // pred_check_branch
          %240 = sbr.rel (%p237) target = $region44
        $region43: #{tpu_custom_call.1} parent=35 // pred_region
          %v241 = vld [vmem:[%s1] sm:$0xf]
          %v242 = vld [vmem:[%s1 + $0x4] sm:$0xf]
          %v243 = vld [vmem:[%s1 + $0x8] sm:$0xf]
          %v244 = vld [vmem:[%s1 + $0xc] sm:$0xf]
          %v245 = vld [vmem:[%s1 + $0x10] sm:$0xf]
          %v246 = vld [vmem:[%s1 + $0x14] sm:$0xf]
          %v247 = vld [vmem:[%s1 + $0x18] sm:$0xf]
          %v248 = vld [vmem:[%s1 + $0x1c] sm:$0xf]
          %v249 = vld [vmem:[%s1 + $0x20] sm:$0xf]
          %v250 = vld [vmem:[%s1 + $0x24] sm:$0xf]
          %v251 = vld [vmem:[%s1 + $0x28] sm:$0xf]
          %v252 = vld [vmem:[%s1 + $0x2c] sm:$0xf]
          %v253 = vld [vmem:[%s1 + $0x30] sm:$0xf]
          %v254 = vld [vmem:[%s1 + $0x34] sm:$0xf]
          %v255 = vld [vmem:[%s1 + $0x38] sm:$0xf]
          %v256 = vld [vmem:[%s1 + $0x3c] sm:$0xf]
          %v257 = vld [vmem:[%s1 + $0x40] sm:$0xf]
          %v258 = vld [vmem:[%s1 + $0x44] sm:$0xf]
          %v259 = vld [vmem:[%s1 + $0x48] sm:$0xf]
          %v260 = vld [vmem:[%s1 + $0x4c] sm:$0xf]
          %v261 = vld [vmem:[%s1 + $0x50] sm:$0xf]
          %v262 = vld [vmem:[%s1 + $0x54] sm:$0xf]
          %v263 = vld [vmem:[%s1 + $0x58] sm:$0xf]
          %v264 = vld [vmem:[%s1 + $0x5c] sm:$0xf]
          %v265 = vld [vmem:[%s1 + $0x60] sm:$0xf]
          %v266 = vld [vmem:[%s1 + $0x64] sm:$0xf]
          %v267 = vld [vmem:[%s1 + $0x68] sm:$0xf]
          %v268 = vld [vmem:[%s1 + $0x6c] sm:$0xf]
          %v269 = vld [vmem:[%s1 + $0x70] sm:$0xf]
          %v270 = vld [vmem:[%s1 + $0x74] sm:$0xf]
          %v271 = vld [vmem:[%s1 + $0x78] sm:$0xf]
          %v272 = vld [vmem:[%s1 + $0x7c] sm:$0xf]
          %v273 = vunpack.c.l.bf16 %v241
          %v274 = vunpack.c.l.bf16 %v242
          %v275 = vunpack.c.l.bf16 %v243
          %v276 = vunpack.c.l.bf16 %v244
          %v277 = vunpack.c.l.bf16 %v245
          %v278 = vunpack.c.l.bf16 %v246
          %v279 = vunpack.c.l.bf16 %v247
          %v280 = vunpack.c.l.bf16 %v248
          %v281 = vunpack.c.l.bf16 %v249
          %v282 = vunpack.c.l.bf16 %v250
          %v283 = vunpack.c.l.bf16 %v251
          %v284 = vunpack.c.l.bf16 %v252
          %v285 = vunpack.c.l.bf16 %v253
          %v286 = vunpack.c.l.bf16 %v254
          %v287 = vunpack.c.l.bf16 %v255
          %v288 = vunpack.c.l.bf16 %v256
          %v289 = vunpack.c.l.bf16 %v257
          %v290 = vunpack.c.l.bf16 %v258
          %v291 = vunpack.c.l.bf16 %v259
          %v292 = vunpack.c.l.bf16 %v260
          %v293 = vunpack.c.l.bf16 %v261
          %v294 = vunpack.c.l.bf16 %v262
          %v295 = vunpack.c.l.bf16 %v263
          %v296 = vunpack.c.l.bf16 %v264
          %v297 = vunpack.c.l.bf16 %v265
          %v298 = vunpack.c.l.bf16 %v266
          %v299 = vunpack.c.l.bf16 %v267
          %v300 = vunpack.c.l.bf16 %v268
          %v301 = vunpack.c.l.bf16 %v269
          %v302 = vunpack.c.l.bf16 %v270
          %v303 = vunpack.c.l.bf16 %v271
          %v304 = vunpack.c.l.bf16 %v272
          %s305 = scalar_lea.vmem [#allocation2], 256
          %vm306 = vcmask 261120
          %307 = vst.msk [vmem:[%s305] sm:$0xff] %vm306, %v273
          %308 = vst.msk [vmem:[%s305 + $0x8] sm:$0xff] %vm306, %v274
          %309 = vst.msk [vmem:[%s305 + $0x10] sm:$0xff] %vm306, %v275
          %310 = vst.msk [vmem:[%s305 + $0x18] sm:$0xff] %vm306, %v276
          %311 = vst.msk [vmem:[%s305 + $0x20] sm:$0xff] %vm306, %v277
          %312 = vst.msk [vmem:[%s305 + $0x28] sm:$0xff] %vm306, %v278
          %313 = vst.msk [vmem:[%s305 + $0x30] sm:$0xff] %vm306, %v279
          %314 = vst.msk [vmem:[%s305 + $0x38] sm:$0xff] %vm306, %v280
          %315 = vst.msk [vmem:[%s305 + $0x40] sm:$0xff] %vm306, %v281
          %316 = vst.msk [vmem:[%s305 + $0x48] sm:$0xff] %vm306, %v282
          %317 = vst.msk [vmem:[%s305 + $0x50] sm:$0xff] %vm306, %v283
          %318 = vst.msk [vmem:[%s305 + $0x58] sm:$0xff] %vm306, %v284
          %319 = vst.msk [vmem:[%s305 + $0x60] sm:$0xff] %vm306, %v285
          %320 = vst.msk [vmem:[%s305 + $0x68] sm:$0xff] %vm306, %v286
          %321 = vst.msk [vmem:[%s305 + $0x70] sm:$0xff] %vm306, %v287
          %322 = vst.msk [vmem:[%s305 + $0x78] sm:$0xff] %vm306, %v288
          %323 = vst.msk [vmem:[%s305 + $0x80] sm:$0xff] %vm306, %v289
          %324 = vst.msk [vmem:[%s305 + $0x88] sm:$0xff] %vm306, %v290
          %325 = vst.msk [vmem:[%s305 + $0x90] sm:$0xff] %vm306, %v291
          %326 = vst.msk [vmem:[%s305 + $0x98] sm:$0xff] %vm306, %v292
          %327 = vst.msk [vmem:[%s305 + $0xa0] sm:$0xff] %vm306, %v293
          %328 = vst.msk [vmem:[%s305 + $0xa8] sm:$0xff] %vm306, %v294
          %329 = vst.msk [vmem:[%s305 + $0xb0] sm:$0xff] %vm306, %v295
          %330 = vst.msk [vmem:[%s305 + $0xb8] sm:$0xff] %vm306, %v296
          %331 = vst.msk [vmem:[%s305 + $0xc0] sm:$0xff] %vm306, %v297
          %332 = vst.msk [vmem:[%s305 + $0xc8] sm:$0xff] %vm306, %v298
          %333 = vst.msk [vmem:[%s305 + $0xd0] sm:$0xff] %vm306, %v299
          %334 = vst.msk [vmem:[%s305 + $0xd8] sm:$0xff] %vm306, %v300
          %335 = vst.msk [vmem:[%s305 + $0xe0] sm:$0xff] %vm306, %v301
          %336 = vst.msk [vmem:[%s305 + $0xe8] sm:$0xff] %vm306, %v302
          %337 = vst.msk [vmem:[%s305 + $0xf0] sm:$0xff] %vm306, %v303
          %338 = vst.msk [vmem:[%s305 + $0xf8] sm:$0xff] %vm306, %v304
        $region44: #{tpu_custom_call.1} parent=35 // pred_fallthru
          _
        %p339 = scmp.ne.s32.totalorder %s22, 2
        %p340 = pnand %p235, %p339
        %p341 = pneg %p340
        // Predicated region
        $region45: #{tpu_custom_call.1} parent=35 // pred_check
          _
        $region46: #{tpu_custom_call.1} parent=35 // pred_check_branch
          %343 = sbr.rel (%p340) target = $region48
        $region47: #{tpu_custom_call.1} parent=35 // pred_region
          %vm344 = vcmask 130048
          %345 = vst.msk [vmem:[%s231] sm:$0xff] %vm344, 0.0
          %346 = vst.msk [vmem:[%s231 + $0x8] sm:$0xff] %vm344, 0.0
          %347 = vst.msk [vmem:[%s231 + $0x10] sm:$0xff] %vm344, 0.0
          %348 = vst.msk [vmem:[%s231 + $0x18] sm:$0xff] %vm344, 0.0
          %349 = vst.msk [vmem:[%s231 + $0x20] sm:$0xff] %vm344, 0.0
          %350 = vst.msk [vmem:[%s231 + $0x28] sm:$0xff] %vm344, 0.0
          %351 = vst.msk [vmem:[%s231 + $0x30] sm:$0xff] %vm344, 0.0
          %352 = vst.msk [vmem:[%s231 + $0x38] sm:$0xff] %vm344, 0.0
          %353 = vst.msk [vmem:[%s231 + $0x40] sm:$0xff] %vm344, 0.0
          %354 = vst.msk [vmem:[%s231 + $0x48] sm:$0xff] %vm344, 0.0
          %355 = vst.msk [vmem:[%s231 + $0x50] sm:$0xff] %vm344, 0.0
          %356 = vst.msk [vmem:[%s231 + $0x58] sm:$0xff] %vm344, 0.0
          %357 = vst.msk [vmem:[%s231 + $0x60] sm:$0xff] %vm344, 0.0
          %358 = vst.msk [vmem:[%s231 + $0x68] sm:$0xff] %vm344, 0.0
          %359 = vst.msk [vmem:[%s231 + $0x70] sm:$0xff] %vm344, 0.0
          %360 = vst.msk [vmem:[%s231 + $0x78] sm:$0xff] %vm344, 0.0
        $region48: #{tpu_custom_call.1} parent=35 // pred_fallthru
          _
        %s361 = sadd.s32 %s22, 1
        %p362 = scmp.lt.s32.totalorder %s361, 0
        %s363 = ssub.s32 0, %s361
        %s364 = scalar_select %p362, %s363, %s361
        %s365 = sand.u32 %s364, 1
        %s366 = ssub.s32 0, %s365
        %s367 = scalar_select %p362, %s366, %s365
        %p368 = scmp.ne.s32.totalorder %s367, 0
        %p369 = scmp.lt.s32.totalorder %s367, 0
        %p370 = pnand %p369, %p368
        %p371 = pneg %p370
        %s372 = sadd.s32 %s367, 2
        %s373 = scalar_select %p371, %s372, %s367
        %v374 = vld [vmem:[%s201] sm:$0xff]
        %v375 = vld [vmem:[%s201 + $0x8] sm:$0xff]
        %v376 = vld [vmem:[%s201 + $0x10] sm:$0xff]
        %v377 = vld [vmem:[%s201 + $0x18] sm:$0xff]
        %v378 = vld [vmem:[%s201 + $0x20] sm:$0xff]
        %v379 = vld [vmem:[%s201 + $0x28] sm:$0xff]
        %v380 = vld [vmem:[%s201 + $0x30] sm:$0xff]
        %v381 = vld [vmem:[%s201 + $0x38] sm:$0xff]
        %v382 = vld [vmem:[%s201 + $0x40] sm:$0xff]
        %v383 = vld [vmem:[%s201 + $0x48] sm:$0xff]
        %v384 = vld [vmem:[%s201 + $0x50] sm:$0xff]
        %v385 = vld [vmem:[%s201 + $0x58] sm:$0xff]
        %v386 = vld [vmem:[%s201 + $0x60] sm:$0xff]
        %v387 = vld [vmem:[%s201 + $0x68] sm:$0xff]
        %v388 = vld [vmem:[%s201 + $0x70] sm:$0xff]
        %v389 = vld [vmem:[%s201 + $0x78] sm:$0xff]
        %s390 = smul.u32 %s373, 256
        %s391 = scalar_lea.vmem [#allocation2], %s390
        %v392 = vld [vmem:[%s391] sm:$0xff]
        %v393 = vld [vmem:[%s391 + $0x8] sm:$0xff]
        %v394 = vld [vmem:[%s391 + $0x10] sm:$0xff]
        %v395 = vld [vmem:[%s391 + $0x18] sm:$0xff]
        %v396 = vld [vmem:[%s391 + $0x20] sm:$0xff]
        %v397 = vld [vmem:[%s391 + $0x28] sm:$0xff]
        %v398 = vld [vmem:[%s391 + $0x30] sm:$0xff]
        %v399 = vld [vmem:[%s391 + $0x38] sm:$0xff]
        %v400 = vld [vmem:[%s391 + $0x40] sm:$0xff]
        %v401 = vld [vmem:[%s391 + $0x48] sm:$0xff]
        %v402 = vld [vmem:[%s391 + $0x50] sm:$0xff]
        %v403 = vld [vmem:[%s391 + $0x58] sm:$0xff]
        %v404 = vld [vmem:[%s391 + $0x60] sm:$0xff]
        %v405 = vld [vmem:[%s391 + $0x68] sm:$0xff]
        %v406 = vld [vmem:[%s391 + $0x70] sm:$0xff]
        %v407 = vld [vmem:[%s391 + $0x78] sm:$0xff]
        %v408 = vld [vmem:[%s391 + $0x80] sm:$0xff]
        %v409 = vld [vmem:[%s391 + $0x88] sm:$0xff]
        %v410 = vld [vmem:[%s391 + $0x90] sm:$0xff]
        %v411 = vld [vmem:[%s391 + $0x98] sm:$0xff]
        %v412 = vld [vmem:[%s391 + $0xa0] sm:$0xff]
        %v413 = vld [vmem:[%s391 + $0xa8] sm:$0xff]
        %v414 = vld [vmem:[%s391 + $0xb0] sm:$0xff]
        %v415 = vld [vmem:[%s391 + $0xb8] sm:$0xff]
        %v416 = vld [vmem:[%s391 + $0xc0] sm:$0xff]
        %v417 = vld [vmem:[%s391 + $0xc8] sm:$0xff]
        %v418 = vld [vmem:[%s391 + $0xd0] sm:$0xff]
        %v419 = vld [vmem:[%s391 + $0xd8] sm:$0xff]
        %v420 = vld [vmem:[%s391 + $0xe0] sm:$0xff]
        %v421 = vld [vmem:[%s391 + $0xe8] sm:$0xff]
        %v422 = vld [vmem:[%s391 + $0xf0] sm:$0xff]
        %v423 = vld [vmem:[%s391 + $0xf8] sm:$0xff]
        %v424 = vpack.c.bf16 %v393, %v392
        %v425 = vpack.c.bf16 %v395, %v394
        %v426 = vpack.c.bf16 %v397, %v396
        %v427 = vpack.c.bf16 %v399, %v398
        %v428 = vpack.c.bf16 %v401, %v400
        %v429 = vpack.c.bf16 %v403, %v402
        %v430 = vpack.c.bf16 %v405, %v404
        %v431 = vpack.c.bf16 %v407, %v406
        %v432 = vpack.c.bf16 %v409, %v408
        %v433 = vpack.c.bf16 %v411, %v410
        %v434 = vpack.c.bf16 %v413, %v412
        %v435 = vpack.c.bf16 %v415, %v414
        %v436 = vpack.c.bf16 %v417, %v416
        %v437 = vpack.c.bf16 %v419, %v418
        %v438 = vpack.c.bf16 %v421, %v420
        %v439 = vpack.c.bf16 %v423, %v422
        %v456 = vunpack.c.l.b16 %v374
        %v457 = vunpack.c.h.b16 %v374
        %v458 = vunpack.c.l.b16 %v375
        %v459 = vunpack.c.h.b16 %v375
        %v460 = vunpack.c.l.b16 %v376
        %v461 = vunpack.c.h.b16 %v376
        %v462 = vunpack.c.l.b16 %v377
        %v463 = vunpack.c.h.b16 %v377
        %v464 = vunpack.c.l.b16 %v378
        %v465 = vunpack.c.h.b16 %v378
        %v466 = vunpack.c.l.b16 %v379
        %v467 = vunpack.c.h.b16 %v379
        %v468 = vunpack.c.l.b16 %v380
        %v469 = vunpack.c.h.b16 %v380
        %v470 = vunpack.c.l.b16 %v381
        %v471 = vunpack.c.h.b16 %v381
        %v472 = vunpack.c.l.b16 %v382
        %v473 = vunpack.c.h.b16 %v382
        %v474 = vunpack.c.l.b16 %v383
        %v475 = vunpack.c.h.b16 %v383
        %v476 = vunpack.c.l.b16 %v384
        %v477 = vunpack.c.h.b16 %v384
        %v478 = vunpack.c.l.b16 %v385
        %v479 = vunpack.c.h.b16 %v385
        %v480 = vunpack.c.l.b16 %v386
        %v481 = vunpack.c.h.b16 %v386
        %v482 = vunpack.c.l.b16 %v387
        %v483 = vunpack.c.h.b16 %v387
        %v484 = vunpack.c.l.b16 %v388
        %v485 = vunpack.c.h.b16 %v388
        %v486 = vunpack.c.l.b16 %v389
        %v487 = vunpack.c.h.b16 %v389
        %v488 = vpack.c.b16 %v458, %v456
        %v489 = vpack.c.b16 %v459, %v457
        %v490 = vpack.c.b16 %v462, %v460
        %v491 = vpack.c.b16 %v463, %v461
        %v492 = vpack.c.b16 %v466, %v464
        %v493 = vpack.c.b16 %v467, %v465
        %v494 = vpack.c.b16 %v470, %v468
        %v495 = vpack.c.b16 %v471, %v469
        %v496 = vpack.c.b16 %v474, %v472
        %v497 = vpack.c.b16 %v475, %v473
        %v498 = vpack.c.b16 %v478, %v476
        %v499 = vpack.c.b16 %v479, %v477
        %v500 = vpack.c.b16 %v482, %v480
        %v501 = vpack.c.b16 %v483, %v481
        %v502 = vpack.c.b16 %v486, %v484
        %v503 = vpack.c.b16 %v487, %v485
        %520 = vmatprep.subr.bf16.mxu0 0
        %521 = vmatpush1.bf16.msra.mxu0 %v424
        %522 = vmatprep.subr.bf16.mxu0 0
        %523 = vmatpush1.bf16.msra.mxu0 %v425
        %524 = vmatprep.subr.bf16.mxu0 0
        %525 = vmatpush1.bf16.msra.mxu0 %v426
        %526 = vmatprep.subr.bf16.mxu0 0
        %527 = vmatpush1.bf16.msra.mxu0 %v427
        %528 = vmatprep.subr.bf16.mxu0 0
        %529 = vmatpush1.bf16.msra.mxu0 %v428
        %530 = vmatprep.subr.bf16.mxu0 0
        %531 = vmatpush1.bf16.msra.mxu0 %v429
        %532 = vmatprep.subr.bf16.mxu0 0
        %533 = vmatpush1.bf16.msra.mxu0 %v430
        %534 = vmatprep.subr.bf16.mxu0 0
        %535 = vmatpush1.bf16.msra.mxu0 %v431
        %536 = vmatprep.subr.bf16.mxu0 0
        %537 = vmatpush1.bf16.msra.mxu0 %v432
        %538 = vmatprep.subr.bf16.mxu0 0
        %539 = vmatpush1.bf16.msra.mxu0 %v433
        %540 = vmatprep.subr.bf16.mxu0 0
        %541 = vmatpush1.bf16.msra.mxu0 %v434
        %542 = vmatprep.subr.bf16.mxu0 0
        %543 = vmatpush1.bf16.msra.mxu0 %v435
        %544 = vmatprep.subr.bf16.mxu0 0
        %545 = vmatpush1.bf16.msra.mxu0 %v436
        %546 = vmatprep.subr.bf16.mxu0 0
        %547 = vmatpush1.bf16.msra.mxu0 %v437
        %548 = vmatprep.subr.bf16.mxu0 0
        %549 = vmatpush1.bf16.msra.mxu0 %v438
        %550 = vmatprep.subr.bf16.mxu0 0
        %551 = vmatpush1.bf16.msra.mxu0 %v439
        %552 = vmatprep.mubr.bf16.mxu0 %v489
        %553 = vmatmul.mubr.bf16.gmra.mrb[0].mxu0 %v488
        %v554 = vpop.f32.mrb[0].mxu0
        %v555 = vadd.f32 0.0, %v554
        %v556 = vpop.f32.mrb[0].mxu0
        %v557 = vpop.f32.mrb[0].mxu0
        %v558 = vadd.f32 0.0, %v557
        %v559 = vpop.f32.mrb[0].mxu0
        %560 = vmatprep.mubr.bf16.mxu0 %v491
        %561 = vmatmul.mubr.bf16.gmra.mrb[0].mxu0 %v490
        %v562 = vpop.f32.mrb[0].mxu0
        %v563 = vadd.f32 0.0, %v562
        %v564 = vpop.f32.mrb[0].mxu0
        %v565 = vpop.f32.mrb[0].mxu0
        %v566 = vadd.f32 0.0, %v565
        %v567 = vpop.f32.mrb[0].mxu0
        %568 = vmatprep.mubr.bf16.mxu0 %v493
        %569 = vmatmul.mubr.bf16.gmra.mrb[0].mxu0 %v492
        %v570 = vpop.f32.mrb[0].mxu0
        %v571 = vadd.f32 0.0, %v570
        %v572 = vpop.f32.mrb[0].mxu0
        %v573 = vpop.f32.mrb[0].mxu0
        %v574 = vadd.f32 0.0, %v573
        %v575 = vpop.f32.mrb[0].mxu0
        %576 = vmatprep.mubr.bf16.mxu0 %v495
        %577 = vmatmul.mubr.bf16.gmra.mrb[0].mxu0 %v494
        %v578 = vpop.f32.mrb[0].mxu0
        %v579 = vadd.f32 0.0, %v578
        %v580 = vpop.f32.mrb[0].mxu0
        %v581 = vpop.f32.mrb[0].mxu0
        %v582 = vadd.f32 0.0, %v581
        %v583 = vpop.f32.mrb[0].mxu0
        %584 = vmatprep.mubr.bf16.mxu0 %v497
        %585 = vmatmul.mubr.bf16.gmra.mrb[0].mxu0 %v496
        %v586 = vpop.f32.mrb[0].mxu0
        %v587 = vadd.f32 0.0, %v586
        %v588 = vpop.f32.mrb[0].mxu0
        %v589 = vpop.f32.mrb[0].mxu0
        %v590 = vadd.f32 0.0, %v589
        %v591 = vpop.f32.mrb[0].mxu0
        %592 = vmatprep.mubr.bf16.mxu0 %v499
        %593 = vmatmul.mubr.bf16.gmra.mrb[0].mxu0 %v498
        %v594 = vpop.f32.mrb[0].mxu0
        %v595 = vadd.f32 0.0, %v594
        %v596 = vpop.f32.mrb[0].mxu0
        %v597 = vpop.f32.mrb[0].mxu0
        %v598 = vadd.f32 0.0, %v597
        %v599 = vpop.f32.mrb[0].mxu0
        %600 = vmatprep.mubr.bf16.mxu0 %v501
        %601 = vmatmul.mubr.bf16.gmra.mrb[0].mxu0 %v500
        %v602 = vpop.f32.mrb[0].mxu0
        %v603 = vadd.f32 0.0, %v602
        %v604 = vpop.f32.mrb[0].mxu0
        %v605 = vpop.f32.mrb[0].mxu0
        %v606 = vadd.f32 0.0, %v605
        %v607 = vpop.f32.mrb[0].mxu0
        %608 = vmatprep.mubr.bf16.mxu0 %v503
        %609 = vmatmul.mubr.bf16.gmra.mrb[0].mxu0 %v502
        %v610 = vpop.f32.mrb[0].mxu0
        %v611 = vadd.f32 0.0, %v610
        %v612 = vpop.f32.mrb[0].mxu0
        %v613 = vpop.f32.mrb[0].mxu0
        %v614 = vadd.f32 0.0, %v613
        %v615 = vpop.f32.mrb[0].mxu0
        %616 = vdwg.mxu0
        %s617 = smul.u32 %s23, 128
        %p618 = scmp.lt.s32.totalorder %s22, 0
        %s619 = ssub.s32 0, %s22
        %s620 = scalar_select %p618, %s619, %s22
        %s621 = sand.u32 %s620, 1
        %s622 = ssub.s32 0, %s621
        %s623 = scalar_select %p618, %s622, %s621
        %p624 = scmp.ne.s32.totalorder %s623, 0
        %p625 = scmp.lt.s32.totalorder %s623, 0
        %p626 = pnand %p625, %p624
        %p627 = pneg %p626
        %s628 = sadd.s32 %s623, 2
        %s629 = scalar_select %p627, %s628, %s623
        %p630 = scmp.eq.s32.totalorder %s629, 0
        %p631 = pnand %p339, %p630
        %p632 = pneg %p631
        // Predicated region
        $region49: #{tpu_custom_call.1} parent=35 // pred_check
          _
        $region50: #{tpu_custom_call.1} parent=35 // pred_check_branch
          %634 = sbr.rel (%p631) target = $region52
        $region51: #{tpu_custom_call.1} parent=35 // pred_region
          %s635 = scalar_lea.vmem [#allocation2], %s617
          %vm636 = vcmask 261120
          %637 = vst.msk [vmem:[%s635] sm:$0xff] %vm636, %v555
          %638 = vst.msk [vmem:[%s635 + $0x8] sm:$0xff] %vm636, %v558
          %639 = vst.msk [vmem:[%s635 + $0x10] sm:$0xff] %vm636, %v563
          %640 = vst.msk [vmem:[%s635 + $0x18] sm:$0xff] %vm636, %v566
          %641 = vst.msk [vmem:[%s635 + $0x20] sm:$0xff] %vm636, %v571
          %642 = vst.msk [vmem:[%s635 + $0x28] sm:$0xff] %vm636, %v574
          %643 = vst.msk [vmem:[%s635 + $0x30] sm:$0xff] %vm636, %v579
          %644 = vst.msk [vmem:[%s635 + $0x38] sm:$0xff] %vm636, %v582
          %645 = vst.msk [vmem:[%s635 + $0x40] sm:$0xff] %vm636, %v587
          %646 = vst.msk [vmem:[%s635 + $0x48] sm:$0xff] %vm636, %v590
          %647 = vst.msk [vmem:[%s635 + $0x50] sm:$0xff] %vm636, %v595
          %648 = vst.msk [vmem:[%s635 + $0x58] sm:$0xff] %vm636, %v598
          %649 = vst.msk [vmem:[%s635 + $0x60] sm:$0xff] %vm636, %v603
          %650 = vst.msk [vmem:[%s635 + $0x68] sm:$0xff] %vm636, %v606
          %651 = vst.msk [vmem:[%s635 + $0x70] sm:$0xff] %vm636, %v611
          %652 = vst.msk [vmem:[%s635 + $0x78] sm:$0xff] %vm636, %v614
        $region52: #{tpu_custom_call.1} parent=35 // pred_fallthru
          _
        %p653 = scmp.eq.s32.totalorder %s629, 1
        %p654 = pnand %p339, %p653
        %p655 = pneg %p654
        // Predicated region
        $region53: #{tpu_custom_call.1} parent=35 // pred_check
          _
        $region54: #{tpu_custom_call.1} parent=35 // pred_check_branch
          %657 = sbr.rel (%p654) target = $region56
        $region55: #{tpu_custom_call.1} parent=35 // pred_region
          %s658 = sadd.s32 %s617, 256
          %s659 = scalar_lea.vmem [#allocation2], %s658
          %vm660 = vcmask 261120
          %661 = vst.msk [vmem:[%s659] sm:$0xff] %vm660, %v555
          %662 = vst.msk [vmem:[%s659 + $0x8] sm:$0xff] %vm660, %v558
          %663 = vst.msk [vmem:[%s659 + $0x10] sm:$0xff] %vm660, %v563
          %664 = vst.msk [vmem:[%s659 + $0x18] sm:$0xff] %vm660, %v566
          %665 = vst.msk [vmem:[%s659 + $0x20] sm:$0xff] %vm660, %v571
          %666 = vst.msk [vmem:[%s659 + $0x28] sm:$0xff] %vm660, %v574
          %667 = vst.msk [vmem:[%s659 + $0x30] sm:$0xff] %vm660, %v579
          %668 = vst.msk [vmem:[%s659 + $0x38] sm:$0xff] %vm660, %v582
          %669 = vst.msk [vmem:[%s659 + $0x40] sm:$0xff] %vm660, %v587
          %670 = vst.msk [vmem:[%s659 + $0x48] sm:$0xff] %vm660, %v590
          %671 = vst.msk [vmem:[%s659 + $0x50] sm:$0xff] %vm660, %v595
          %672 = vst.msk [vmem:[%s659 + $0x58] sm:$0xff] %vm660, %v598
          %673 = vst.msk [vmem:[%s659 + $0x60] sm:$0xff] %vm660, %v603
          %674 = vst.msk [vmem:[%s659 + $0x68] sm:$0xff] %vm660, %v606
          %675 = vst.msk [vmem:[%s659 + $0x70] sm:$0xff] %vm660, %v611
          %676 = vst.msk [vmem:[%s659 + $0x78] sm:$0xff] %vm660, %v614
        $region56: #{tpu_custom_call.1} parent=35 // pred_fallthru
          _
        // Predicated region
        $region57: #{tpu_custom_call.1} parent=35 // pred_check
          %p677 = pneg %p234
        $region58: #{tpu_custom_call.1} parent=35 // pred_check_branch
          %679 = sbr.rel (%p677) target = $region60
        $region59: #{tpu_custom_call.1} parent=35 // pred_region
          %v680 = vpack.c.bf16 %v558, %v555
          %v681 = vpack.c.bf16 %v566, %v563
          %v682 = vpack.c.bf16 %v574, %v571
          %v683 = vpack.c.bf16 %v582, %v579
          %v684 = vpack.c.bf16 %v590, %v587
          %v685 = vpack.c.bf16 %v598, %v595
          %v686 = vpack.c.bf16 %v606, %v603
          %v687 = vpack.c.bf16 %v614, %v611
          %v688 = vld [vmem:[%s2] sm:$0xf]
          %v689 = vld [vmem:[%s2 + $0x4] sm:$0xf]
          %v690 = vld [vmem:[%s2 + $0x8] sm:$0xf]
          %v691 = vld [vmem:[%s2 + $0xc] sm:$0xf]
          %v692 = vld [vmem:[%s3] sm:$0x1]
          %v694 = vlaneseq
          %v695 = vshrl.u32 %v694, 7
          %v696 = vsub.s32 0, %v695
          %v697 = vrot.slane %v692, %v696
          %v703 = vunpack.c.l.b16 %v688
          %v704 = vunpack.c.l.b16 %v689
          %v705 = vunpack.c.l.b16 %v690
          %v706 = vunpack.c.l.b16 %v691
          %v707 = vpack.c.b16 %v704, %v703
          %v708 = vpack.c.b16 %v706, %v705
          %vm711 = vcmask 261120
          %v713 = vsel %vm711, %v680, 0
          %v716 = vsel %vm711, %v681, 0
          %v719 = vsel %vm711, %v682, 0
          %v722 = vsel %vm711, %v683, 0
          %v725 = vsel %vm711, %v684, 0
          %v728 = vsel %vm711, %v685, 0
          %v731 = vsel %vm711, %v686, 0
          %v734 = vsel %vm711, %v687, 0
          %736 = vmatprep.subr.bf16.mxu0 0
          %737 = vmatpush1.bf16.msra.mxu0 %v707
          %738 = vmatprep.subr.bf16.mxu0 0
          %739 = vmatpush1.bf16.msra.mxu0 %v708
          %740 = vmatprep.subr.bf16.mxu0 0
          %741 = vmatpush1.bf16.msra.mxu0 0
          %742 = vmatprep.subr.bf16.mxu0 0
          %743 = vmatpush1.bf16.msra.mxu0 0
          %744 = vmatprep.subr.bf16.mxu0 0
          %745 = vmatpush1.bf16.msra.mxu0 0
          %746 = vmatprep.subr.bf16.mxu0 0
          %747 = vmatpush1.bf16.msra.mxu0 0
          %748 = vmatprep.subr.bf16.mxu0 0
          %749 = vmatpush1.bf16.msra.mxu0 0
          %750 = vmatprep.subr.bf16.mxu0 0
          %751 = vmatpush1.bf16.msra.mxu0 0
          %752 = vmatprep.subr.bf16.mxu0 0
          %753 = vmatpush1.bf16.msra.mxu0 0
          %754 = vmatprep.subr.bf16.mxu0 0
          %755 = vmatpush1.bf16.msra.mxu0 0
          %756 = vmatprep.subr.bf16.mxu0 0
          %757 = vmatpush1.bf16.msra.mxu0 0
          %758 = vmatprep.subr.bf16.mxu0 0
          %759 = vmatpush1.bf16.msra.mxu0 0
          %760 = vmatprep.subr.bf16.mxu0 0
          %761 = vmatpush1.bf16.msra.mxu0 0
          %762 = vmatprep.subr.bf16.mxu0 0
          %763 = vmatpush1.bf16.msra.mxu0 0
          %764 = vmatprep.subr.bf16.mxu0 0
          %765 = vmatpush1.bf16.msra.mxu0 0
          %766 = vmatprep.subr.bf16.mxu0 0
          %767 = vmatpush1.bf16.msra.mxu0 0
          %768 = vmatprep.mubr.bf16.mxu0 0
          %769 = vmatmul.mubr.bf16.gmra.mrb[0].mxu0 %v713
          %v770 = vpop.f32.mrb[0].mxu0
          %v771 = vadd.f32 %v697, %v770
          %v772 = vpop.f32.mrb[0].mxu0
          %v773 = vpop.f32.mrb[0].mxu0
          %v774 = vadd.f32 %v697, %v773
          %v775 = vpop.f32.mrb[0].mxu0
          %776 = vmatprep.mubr.bf16.mxu0 0
          %777 = vmatmul.mubr.bf16.gmra.mrb[0].mxu0 %v716
          %v778 = vpop.f32.mrb[0].mxu0
          %v779 = vadd.f32 %v697, %v778
          %v780 = vpop.f32.mrb[0].mxu0
          %v781 = vpop.f32.mrb[0].mxu0
          %v782 = vadd.f32 %v697, %v781
          %v783 = vpop.f32.mrb[0].mxu0
          %784 = vmatprep.mubr.bf16.mxu0 0
          %785 = vmatmul.mubr.bf16.gmra.mrb[0].mxu0 %v719
          %v786 = vpop.f32.mrb[0].mxu0
          %v787 = vadd.f32 %v697, %v786
          %v788 = vpop.f32.mrb[0].mxu0
          %v789 = vpop.f32.mrb[0].mxu0
          %v790 = vadd.f32 %v697, %v789
          %v791 = vpop.f32.mrb[0].mxu0
          %792 = vmatprep.mubr.bf16.mxu0 0
          %793 = vmatmul.mubr.bf16.gmra.mrb[0].mxu0 %v722
          %v794 = vpop.f32.mrb[0].mxu0
          %v795 = vadd.f32 %v697, %v794
          %v796 = vpop.f32.mrb[0].mxu0
          %v797 = vpop.f32.mrb[0].mxu0
          %v798 = vadd.f32 %v697, %v797
          %v799 = vpop.f32.mrb[0].mxu0
          %800 = vmatprep.mubr.bf16.mxu0 0
          %801 = vmatmul.mubr.bf16.gmra.mrb[0].mxu0 %v725
          %v802 = vpop.f32.mrb[0].mxu0
          %v803 = vadd.f32 %v697, %v802
          %v804 = vpop.f32.mrb[0].mxu0
          %v805 = vpop.f32.mrb[0].mxu0
          %v806 = vadd.f32 %v697, %v805
          %v807 = vpop.f32.mrb[0].mxu0
          %808 = vmatprep.mubr.bf16.mxu0 0
          %809 = vmatmul.mubr.bf16.gmra.mrb[0].mxu0 %v728
          %v810 = vpop.f32.mrb[0].mxu0
          %v811 = vadd.f32 %v697, %v810
          %v812 = vpop.f32.mrb[0].mxu0
          %v813 = vpop.f32.mrb[0].mxu0
          %v814 = vadd.f32 %v697, %v813
          %v815 = vpop.f32.mrb[0].mxu0
          %816 = vmatprep.mubr.bf16.mxu0 0
          %817 = vmatmul.mubr.bf16.gmra.mrb[0].mxu0 %v731
          %v818 = vpop.f32.mrb[0].mxu0
          %v819 = vadd.f32 %v697, %v818
          %v820 = vpop.f32.mrb[0].mxu0
          %v821 = vpop.f32.mrb[0].mxu0
          %v822 = vadd.f32 %v697, %v821
          %v823 = vpop.f32.mrb[0].mxu0
          %824 = vmatprep.mubr.bf16.mxu0 0
          %825 = vmatmul.mubr.bf16.gmra.mrb[0].mxu0 %v734
          %v826 = vpop.f32.mrb[0].mxu0
          %v827 = vadd.f32 %v697, %v826
          %v828 = vpop.f32.mrb[0].mxu0
          %v829 = vpop.f32.mrb[0].mxu0
          %v830 = vadd.f32 %v697, %v829
          %v831 = vpop.f32.mrb[0].mxu0
          %832 = vdwg.mxu0
          %vm833 = vcmask 130048
          %834 = vst.msk [vmem:[%s231] sm:$0xff] %vm833, %v771
          %835 = vst.msk [vmem:[%s231 + $0x8] sm:$0xff] %vm833, %v774
          %836 = vst.msk [vmem:[%s231 + $0x10] sm:$0xff] %vm833, %v779
          %837 = vst.msk [vmem:[%s231 + $0x18] sm:$0xff] %vm833, %v782
          %838 = vst.msk [vmem:[%s231 + $0x20] sm:$0xff] %vm833, %v787
          %839 = vst.msk [vmem:[%s231 + $0x28] sm:$0xff] %vm833, %v790
          %840 = vst.msk [vmem:[%s231 + $0x30] sm:$0xff] %vm833, %v795
          %841 = vst.msk [vmem:[%s231 + $0x38] sm:$0xff] %vm833, %v798
          %842 = vst.msk [vmem:[%s231 + $0x40] sm:$0xff] %vm833, %v803
          %843 = vst.msk [vmem:[%s231 + $0x48] sm:$0xff] %vm833, %v806
          %844 = vst.msk [vmem:[%s231 + $0x50] sm:$0xff] %vm833, %v811
          %845 = vst.msk [vmem:[%s231 + $0x58] sm:$0xff] %vm833, %v814
          %846 = vst.msk [vmem:[%s231 + $0x60] sm:$0xff] %vm833, %v819
          %847 = vst.msk [vmem:[%s231 + $0x68] sm:$0xff] %vm833, %v822
          %848 = vst.msk [vmem:[%s231 + $0x70] sm:$0xff] %vm833, %v827
          %849 = vst.msk [vmem:[%s231 + $0x78] sm:$0xff] %vm833, %v830
        $region60: #{tpu_custom_call.1} parent=35 // pred_fallthru
          _
        %s850 = smul.u32 16, %s23
        %p851 = scmp.lt.s32.totalorder %s850, 31
        %s852 = scalar_select %p851, %s850, 31
        %s853 = smul.addr %s852, 8
        %s854 = scalar_lea.vmem %s4, %s853
        // Predicated region
        $region61: #{tpu_custom_call.1} parent=35 // pred_check
          %p855 = pneg %p137
        $region62: #{tpu_custom_call.1} parent=35 // pred_check_branch
          %857 = sbr.rel (%p855) target = $region64
        $region63: #{tpu_custom_call.1} parent=35 // pred_region
          %s858 = smul.u32 16, %s23
        $region64: #{tpu_custom_call.1} parent=35 // pred_fallthru
          _
      $region36: #{tpu_custom_call.1} parent=5 // pred_fallthru
        _
      %p859 = scmp.le.s32.totalorder 2, %s13
      // Predicated region
      $region65: #{tpu_custom_call.1} parent=5 // pred_check
        %p860 = pneg %p859
      $region66: #{tpu_custom_call.1} parent=5 // pred_check_branch
        %862 = sbr.rel (%p860) target = $region68
      $region67: #{tpu_custom_call.1} parent=5 // pred_region
        %s863 = ssub.s32 %s13, 2
        // Predicated region
        $region69: #{tpu_custom_call.1} parent=67 // pred_check
          %p864 = pneg %p143
        $region70: #{tpu_custom_call.1} parent=67 // pred_check_branch
          %866 = sbr.rel (%p864) target = $region72
        $region71: #{tpu_custom_call.1} parent=67 // pred_region
          %s867 = smul.u32 16, %s25
          %p868 = scmp.lt.s32.totalorder %s867, 31
          %s869 = scalar_select %p868, %s867, 31
          %s870 = smul.addr %s869, 8
          %s871 = scalar_lea.vmem %s4, %s870
        $region72: #{tpu_custom_call.1} parent=67 // pred_fallthru
          _
      $region68: #{tpu_custom_call.1} parent=5 // pred_fallthru
        _
    $region6: #{tpu_custom_call.1} parent=1 // loop_footer
      %s17 = sadd.s32 1, %s13
    $region7: #{tpu_custom_call.1} parent=1 // loop_footer_branch
      %12 = sbr.rel target = $region3
    $region8: #{tpu_custom_call.1} parent=1 // loop_exit
      _
    %872 = vsyncpa [#allocation4], 1
    %s873 = scalar_lea.sflag [#allocation4], 1
    %874 = vsyncpa %s873, 1

</llo_original>
